<compile_context>
chip_gen: v7x
topology: tpu7x:2x2x1
jax: 0.10.0
libtpu: 0.0.40
codegen_flags: <defaults>
</compile_context>

<pallas_src>
import functools

import jax
import jax.numpy as jnp
from jax.experimental import pallas as pl
from jax.experimental.pallas import tpu as pltpu

# ---------------- model hyper-parameters (small, consistent with __init__) ---
IN_DIM_DRUG = 32        # in_dim_drug
NUM_ATOMS = 16          # atoms per drug (M_Encoder)
NUM_FEAT_PER_ATOM = 8   # num_feat_per_atom
PROT_DRUG_DIM = 64      # prot_drug_dim
N_HID1 = 32             # n_hid1
N_HID2 = 16             # n_hid2 (== self.out_dim)
M_OUT_CHANNELS = 20     # M_Encoder out_channels
OUT_DIM = N_HID2 + PROT_DRUG_DIM + M_OUT_CHANNELS   # 100, concat [ddi|ppi|m]
OUT_DIM_PAD = 128       # lane-dense padded output width
FUSED_N = 128           # padded width of the fused first-layer weight

# packed weight slab (bf16, (80, 128)) row ranges
_ROW_WCAT0, _ROW_WCAT1 = 0, IN_DIM_DRUG                       # [w_ppi | w_ddi1]
_ROW_W2_0, _ROW_W2_1 = IN_DIM_DRUG, IN_DIM_DRUG + N_HID1      # w_ddi2 (32, 16)
_ROW_WM_0, _ROW_WM_1 = _ROW_W2_1, _ROW_W2_1 + NUM_FEAT_PER_ATOM  # w_m (8, 20)
W_PACK_ROWS = 80        # padded to a multiple of 16 (bf16 sublane packing)


def _encoder_kernel(xd_ref, xa_ref, w_ref, b_ref, out_ref):
    f32 = jnp.float32
    blk = xd_ref.shape[0]                                   # static block rows

    # --- fused first layer (PPI head + DDI hidden share LHS): one 128-wide
    # MXU pass, one bias add, one ReLU --------------------------------------
    h = jnp.dot(xd_ref[...], w_ref[_ROW_WCAT0:_ROW_WCAT1, :],
                preferred_element_type=f32)                 # (blk, 128)
    h = jnp.maximum(h + b_ref[0:1, :], 0.0)
    h_ppi = h[:, 0:PROT_DRUG_DIM]                           # (blk, 64)
    h1 = h[:, PROT_DRUG_DIM:PROT_DRUG_DIM + N_HID1]         # (blk, 32)

    # --- DDI second layer: Linear + ReLU -> (blk, N_HID2) --------------------
    w2 = w_ref[_ROW_W2_0:_ROW_W2_1, 0:N_HID2]               # (32, 16) bf16
    h_ddi = jnp.dot(h1.astype(w_ref.dtype), w2, preferred_element_type=f32)
    h_ddi = jnp.maximum(h_ddi + b_ref[1:2, 0:N_HID2], 0.0)  # (blk, 16)

    # --- M branch: pointwise conv over atoms (atom-major block), ReLU, then
    # mean-pool as NA contiguous sublane-aligned slice adds (VPU; no pool
    # matmul, no O(num_drug^2) matrix) ---------------------------------------
    xa = xa_ref[...].reshape(NUM_ATOMS * blk, NUM_FEAT_PER_ATOM)
    wm = w_ref[_ROW_WM_0:_ROW_WM_1, 0:M_OUT_CHANNELS]       # (8, 20) bf16
    hm = jnp.dot(xa, wm, preferred_element_type=f32)        # (NA*blk, 20)
    hm = jnp.maximum(hm + b_ref[2:3, 0:M_OUT_CHANNELS], 0.0)
    acc = hm[0:blk, :]
    for a in range(1, NUM_ATOMS):
        acc = acc + hm[a * blk:(a + 1) * blk, :]
    hm_mean = acc * (1.0 / NUM_ATOMS)                       # (blk, 20)

    # --- assemble: kernel lane order [h_ppi | h_ddi | hm | pad] so the widest
    # chunk needs zero lane-shift; single unmasked lane-dense 128-wide store.
    pad = jnp.zeros((blk, OUT_DIM_PAD - OUT_DIM), f32)
    out_ref[...] = jnp.concatenate([h_ppi, h_ddi, hm_mean, pad], axis=1)


def _round_up(x, m):
    return (x + m - 1) // m * m


def _pack_params(params):
    """One bf16 weight slab + one f32 bias slab (cuts 9 DMAs down to 4)."""
    bf = jnp.bfloat16
    w = jnp.zeros((W_PACK_ROWS, FUSED_N), bf)
    w = w.at[_ROW_WCAT0:_ROW_WCAT1, 0:PROT_DRUG_DIM].set(
        params["w_ppi"].astype(bf))
    w = w.at[_ROW_WCAT0:_ROW_WCAT1,
             PROT_DRUG_DIM:PROT_DRUG_DIM + N_HID1].set(
        params["w_ddi1"].astype(bf))
    w = w.at[_ROW_W2_0:_ROW_W2_1, 0:N_HID2].set(params["w_ddi2"].astype(bf))
    w = w.at[_ROW_WM_0:_ROW_WM_1, 0:M_OUT_CHANNELS].set(
        params["w_m"].astype(bf))

    b = jnp.zeros((8, FUSED_N), jnp.float32)
    b = b.at[0, 0:PROT_DRUG_DIM].set(params["b_ppi"][0])
    b = b.at[0, PROT_DRUG_DIM:PROT_DRUG_DIM + N_HID1].set(params["b_ddi1"][0])
    b = b.at[1, 0:N_HID2].set(params["b_ddi2"][0])
    b = b.at[2, 0:M_OUT_CHANNELS].set(params["b_m"][0])
    return w, b


@functools.partial(jax.jit, static_argnames=("block_rows",))
def encoder_forward(x_drug, x_atoms, params, block_rows=8):
    """Fused Encoder forward.

    block_rows: rows per grid step (multiple of 8).  Use >=256 on v6e/v7x at
    production num_drug; VMEM per step is only O(block_rows), so the default
    scoped VMEM limit is fine (the old quadratic pool matrix is gone).
    """
    num_drug = x_drug.shape[0]
    nd_pad = _round_up(num_drug, block_rows)
    bf = jnp.bfloat16

    # --- wrapper-side (XLA, cheap) layout prep -------------------------------
    xd = x_drug.astype(bf)
    # atom-major layout so each row-block's atoms form one contiguous block
    xa = jnp.transpose(x_atoms, (1, 0, 2)).astype(bf)       # (NA, ND, NF)
    if nd_pad != num_drug:
        xd = jnp.pad(xd, ((0, nd_pad - num_drug), (0, 0)))
        xa = jnp.pad(xa, ((0, 0), (0, nd_pad - num_drug), (0, 0)))
    w_pack, b_pack = _pack_params(params)

    grid = (nd_pad // block_rows,)
    out_padded = pl.pallas_call(
        _encoder_kernel,
        out_shape=jax.ShapeDtypeStruct((nd_pad, OUT_DIM_PAD), jnp.float32),
        grid=grid,
        in_specs=[
            pl.BlockSpec((block_rows, IN_DIM_DRUG), lambda i: (i, 0)),
            pl.BlockSpec((NUM_ATOMS, block_rows, NUM_FEAT_PER_ATOM),
                         lambda i: (0, i, 0)),
            pl.BlockSpec((W_PACK_ROWS, FUSED_N), lambda i: (0, 0)),  # pinned
            pl.BlockSpec((8, FUSED_N), lambda i: (0, 0)),            # pinned
        ],
        out_specs=pl.BlockSpec((block_rows, OUT_DIM_PAD), lambda i: (i, 0)),
        compiler_params=pltpu.CompilerParams(
            dimension_semantics=("parallel",)),
    )(xd, xa, w_pack, b_pack)

    out_padded = out_padded[:num_drug]
    # reorder kernel lane order [ppi | ddi | m] -> module order [ddi | ppi | m]
    return jnp.concatenate(
        [out_padded[:, PROT_DRUG_DIM:PROT_DRUG_DIM + N_HID2],
         out_padded[:, 0:PROT_DRUG_DIM],
         out_padded[:, PROT_DRUG_DIM + N_HID2:OUT_DIM]], axis=1)


def encoder_reference(x_drug, x_atoms, params):
    """Pure-JAX reference mirroring the kernel's mixed precision
    (bf16 operands, f32 accumulation)."""
    bf, f32 = jnp.bfloat16, jnp.float32
    relu = jax.nn.relu
    dot = lambda a, b: jnp.dot(a, b.astype(bf), preferred_element_type=f32)
    xd = x_drug.astype(bf)
    h_ppi = relu(dot(xd, params["w_ppi"]) + params["b_ppi"])
    h1 = relu(dot(xd, params["w_ddi1"]) + params["b_ddi1"])
    h_ddi = relu(dot(h1.astype(bf), params["w_ddi2"]) + params["b_ddi2"])
    hm = relu(jnp.einsum("daf,fc->dac", x_atoms.astype(bf),
                         params["w_m"].astype(bf),
                         preferred_element_type=f32) + params["b_m"])
    hm = hm.mean(axis=1)
    return jnp.concatenate([h_ddi, h_ppi, hm], axis=1)


def make_params(key):
    ks = jax.random.split(key, 8)
    s = lambda k, shape, fan_in: (jax.random.normal(k, shape, jnp.float32)
                                  / jnp.sqrt(float(fan_in)))
    return {
        "w_ppi":  s(ks[0], (IN_DIM_DRUG, PROT_DRUG_DIM), IN_DIM_DRUG),
        "b_ppi":  s(ks[1], (1, PROT_DRUG_DIM), PROT_DRUG_DIM),
        "w_ddi1": s(ks[2], (IN_DIM_DRUG, N_HID1), IN_DIM_DRUG),
        "b_ddi1": s(ks[3], (1, N_HID1), N_HID1),
        "w_ddi2": s(ks[4], (N_HID1, N_HID2), N_HID1),
        "b_ddi2": s(ks[5], (1, N_HID2), N_HID2),
        "w_m":    s(ks[6], (NUM_FEAT_PER_ATOM, M_OUT_CHANNELS),
                    NUM_FEAT_PER_ATOM),
        "b_m":    s(ks[7], (1, M_OUT_CHANNELS), M_OUT_CHANNELS),
    }


if __name__ == "__main__":
    NUM_DRUG = 16   # small; block_rows=8 -> 2 grid steps to exercise the grid
    key = jax.random.PRNGKey(0)
    k_x, k_a, k_p = jax.random.split(key, 3)

    # train_batch surrogate: per-drug feature matrix + per-atom feature tensor
    x_drug = jax.random.normal(k_x, (NUM_DRUG, IN_DIM_DRUG), jnp.float32)
    x_atoms = jax.random.normal(
        k_a, (NUM_DRUG, NUM_ATOMS, NUM_FEAT_PER_ATOM), jnp.float32)
    params = make_params(k_p)

    out = encoder_forward(x_drug, x_atoms, params, block_rows=8)
    out = jax.block_until_ready(out)

    ref = encoder_reference(x_drug, x_atoms, params)
    assert out.shape == (NUM_DRUG, OUT_DIM), out.shape
    max_err = float(jnp.max(jnp.abs(out - ref)))
    assert jnp.allclose(out, ref, atol=1e-2, rtol=1e-2), max_err

    print("KERNEL_OK")
</pallas_src>

<mosaic_0001>
module attributes {stable_mosaic.version = 11 : i64} {
  func.func @_encoder_kernel(%arg0: i32, %arg1: memref<8x32xbf16, #tpu.memory_space<vmem>>, %arg2: memref<16x8x8xbf16, #tpu.memory_space<vmem>>, %arg3: memref<80x128xbf16, #tpu.memory_space<vmem>>, %arg4: memref<8x128xf32, #tpu.memory_space<vmem>>, %arg5: memref<8x128xf32, #tpu.memory_space<vmem>>) attributes {dimension_semantics = [#tpu.dimension_semantics<parallel>], iteration_bounds = array<i64: 2>, scalar_prefetch = 0 : i64, scratch_operands = 0 : i64, tpu.core_type = #tpu.core_type<tc>, window_params = [{transform_indices = @transform_0, window_bounds = array<i64: 8, 32>}, {transform_indices = @transform_1, window_bounds = array<i64: 16, 8, 8>}, {pipeline_mode = #tpu.pipeline_mode<synchronous>, transform_indices = @transform_2, window_bounds = array<i64: 80, 128>}, {pipeline_mode = #tpu.pipeline_mode<synchronous>, transform_indices = @transform_3, window_bounds = array<i64: 8, 128>}, {transform_indices = @transform_4, window_bounds = array<i64: 8, 128>}]} {
    %c0 = arith.constant 0 : index
    %c0_0 = arith.constant 0 : index
    %0 = vector.load %arg1[%c0, %c0_0] : memref<8x32xbf16, #tpu.memory_space<vmem>>, vector<8x32xbf16>
    %c0_1 = arith.constant 0 : index
    %c0_2 = arith.constant 0 : index
    %1 = vector.load %arg3[%c0_1, %c0_2] : memref<80x128xbf16, #tpu.memory_space<vmem>>, vector<32x128xbf16>
    %cst = arith.constant dense<0.000000e+00> : vector<8x128xf32>
    %2 = tpu.matmul %0, %1, %cst {dimension_numbers = #tpu.dot_dimension_numbers<[1], [0], [0], [1], [0, 0, 1, 1], [], []>} : vector<8x32xbf16>, vector<32x128xbf16>, vector<8x128xf32> -> vector<8x128xf32>
    %c0_3 = arith.constant 0 : index
    %c0_4 = arith.constant 0 : index
    %3 = vector.load %arg4[%c0_3, %c0_4] : memref<8x128xf32, #tpu.memory_space<vmem>>, vector<1x128xf32>
    %4 = vector.broadcast %3 : vector<1x128xf32> to vector<8x128xf32>
    %5 = arith.addf %2, %4 : vector<8x128xf32>
    %cst_5 = arith.constant 0.000000e+00 : f32
    %6 = vector.broadcast %cst_5 : f32 to vector<8x128xf32>
    %7 = arith.maximumf %5, %6 : vector<8x128xf32>
    %8 = vector.extract_strided_slice %7 {offsets = [0, 0], sizes = [8, 64], strides = [1, 1]} : vector<8x128xf32> to vector<8x64xf32>
    %9 = vector.extract_strided_slice %7 {offsets = [0, 64], sizes = [8, 32], strides = [1, 1]} : vector<8x128xf32> to vector<8x32xf32>
    %c32 = arith.constant 32 : index
    %c0_6 = arith.constant 0 : index
    %10 = vector.load %arg3[%c32, %c0_6] : memref<80x128xbf16, #tpu.memory_space<vmem>>, vector<32x16xbf16>
    %11 = arith.truncf %9 : vector<8x32xf32> to vector<8x32xbf16>
    %cst_7 = arith.constant dense<0.000000e+00> : vector<8x16xf32>
    %12 = tpu.matmul %11, %10, %cst_7 {dimension_numbers = #tpu.dot_dimension_numbers<[1], [0], [0], [1], [0, 0, 1, 1], [], []>} : vector<8x32xbf16>, vector<32x16xbf16>, vector<8x16xf32> -> vector<8x16xf32>
    %c1 = arith.constant 1 : index
    %c0_8 = arith.constant 0 : index
    %13 = vector.load %arg4[%c1, %c0_8] : memref<8x128xf32, #tpu.memory_space<vmem>>, vector<1x16xf32>
    %14 = vector.broadcast %13 : vector<1x16xf32> to vector<8x16xf32>
    %15 = arith.addf %12, %14 : vector<8x16xf32>
    %cst_9 = arith.constant 0.000000e+00 : f32
    %16 = vector.broadcast %cst_9 : f32 to vector<8x16xf32>
    %17 = arith.maximumf %15, %16 : vector<8x16xf32>
    %c0_10 = arith.constant 0 : index
    %c0_11 = arith.constant 0 : index
    %c0_12 = arith.constant 0 : index
    %18 = vector.load %arg2[%c0_10, %c0_11, %c0_12] : memref<16x8x8xbf16, #tpu.memory_space<vmem>>, vector<16x8x8xbf16>
    %19 = vector.shape_cast %18 : vector<16x8x8xbf16> to vector<128x8xbf16>
    %c64 = arith.constant 64 : index
    %c0_13 = arith.constant 0 : index
    %20 = vector.load %arg3[%c64, %c0_13] : memref<80x128xbf16, #tpu.memory_space<vmem>>, vector<8x20xbf16>
    %cst_14 = arith.constant dense<0.000000e+00> : vector<128x20xf32>
    %21 = tpu.matmul %19, %20, %cst_14 {dimension_numbers = #tpu.dot_dimension_numbers<[1], [0], [0], [1], [0, 0, 1, 1], [], []>} : vector<128x8xbf16>, vector<8x20xbf16>, vector<128x20xf32> -> vector<128x20xf32>
    %c2 = arith.constant 2 : index
    %c0_15 = arith.constant 0 : index
    %22 = vector.load %arg4[%c2, %c0_15] : memref<8x128xf32, #tpu.memory_space<vmem>>, vector<1x20xf32>
    %23 = vector.broadcast %22 : vector<1x20xf32> to vector<128x20xf32>
    %24 = arith.addf %21, %23 : vector<128x20xf32>
    %cst_16 = arith.constant 0.000000e+00 : f32
    %25 = vector.broadcast %cst_16 : f32 to vector<128x20xf32>
    %26 = arith.maximumf %24, %25 : vector<128x20xf32>
    %27 = vector.extract_strided_slice %26 {offsets = [0, 0], sizes = [8, 20], strides = [1, 1]} : vector<128x20xf32> to vector<8x20xf32>
    %28 = vector.extract_strided_slice %26 {offsets = [8, 0], sizes = [8, 20], strides = [1, 1]} : vector<128x20xf32> to vector<8x20xf32>
    %29 = arith.addf %27, %28 : vector<8x20xf32>
    %30 = vector.extract_strided_slice %26 {offsets = [16, 0], sizes = [8, 20], strides = [1, 1]} : vector<128x20xf32> to vector<8x20xf32>
    %31 = arith.addf %29, %30 : vector<8x20xf32>
    %32 = vector.extract_strided_slice %26 {offsets = [24, 0], sizes = [8, 20], strides = [1, 1]} : vector<128x20xf32> to vector<8x20xf32>
    %33 = arith.addf %31, %32 : vector<8x20xf32>
    %34 = vector.extract_strided_slice %26 {offsets = [32, 0], sizes = [8, 20], strides = [1, 1]} : vector<128x20xf32> to vector<8x20xf32>
    %35 = arith.addf %33, %34 : vector<8x20xf32>
    %36 = vector.extract_strided_slice %26 {offsets = [40, 0], sizes = [8, 20], strides = [1, 1]} : vector<128x20xf32> to vector<8x20xf32>
    %37 = arith.addf %35, %36 : vector<8x20xf32>
    %38 = vector.extract_strided_slice %26 {offsets = [48, 0], sizes = [8, 20], strides = [1, 1]} : vector<128x20xf32> to vector<8x20xf32>
    %39 = arith.addf %37, %38 : vector<8x20xf32>
    %40 = vector.extract_strided_slice %26 {offsets = [56, 0], sizes = [8, 20], strides = [1, 1]} : vector<128x20xf32> to vector<8x20xf32>
    %41 = arith.addf %39, %40 : vector<8x20xf32>
    %42 = vector.extract_strided_slice %26 {offsets = [64, 0], sizes = [8, 20], strides = [1, 1]} : vector<128x20xf32> to vector<8x20xf32>
    %43 = arith.addf %41, %42 : vector<8x20xf32>
    %44 = vector.extract_strided_slice %26 {offsets = [72, 0], sizes = [8, 20], strides = [1, 1]} : vector<128x20xf32> to vector<8x20xf32>
    %45 = arith.addf %43, %44 : vector<8x20xf32>
    %46 = vector.extract_strided_slice %26 {offsets = [80, 0], sizes = [8, 20], strides = [1, 1]} : vector<128x20xf32> to vector<8x20xf32>
    %47 = arith.addf %45, %46 : vector<8x20xf32>
    %48 = vector.extract_strided_slice %26 {offsets = [88, 0], sizes = [8, 20], strides = [1, 1]} : vector<128x20xf32> to vector<8x20xf32>
    %49 = arith.addf %47, %48 : vector<8x20xf32>
    %50 = vector.extract_strided_slice %26 {offsets = [96, 0], sizes = [8, 20], strides = [1, 1]} : vector<128x20xf32> to vector<8x20xf32>
    %51 = arith.addf %49, %50 : vector<8x20xf32>
    %52 = vector.extract_strided_slice %26 {offsets = [104, 0], sizes = [8, 20], strides = [1, 1]} : vector<128x20xf32> to vector<8x20xf32>
    %53 = arith.addf %51, %52 : vector<8x20xf32>
    %54 = vector.extract_strided_slice %26 {offsets = [112, 0], sizes = [8, 20], strides = [1, 1]} : vector<128x20xf32> to vector<8x20xf32>
    %55 = arith.addf %53, %54 : vector<8x20xf32>
    %56 = vector.extract_strided_slice %26 {offsets = [120, 0], sizes = [8, 20], strides = [1, 1]} : vector<128x20xf32> to vector<8x20xf32>
    %57 = arith.addf %55, %56 : vector<8x20xf32>
    %cst_17 = arith.constant 6.250000e-02 : f32
    %58 = vector.broadcast %cst_17 : f32 to vector<8x20xf32>
    %59 = arith.mulf %57, %58 : vector<8x20xf32>
    %cst_18 = arith.constant 0.000000e+00 : f32
    %60 = vector.broadcast %cst_18 : f32 to vector<8x28xf32>
    %61 = tpu.concatenate %8, %17, %59, %60 in 1 : vector<8x64xf32>, vector<8x16xf32>, vector<8x20xf32>, vector<8x28xf32> -> vector<8x128xf32>
    %c0_19 = arith.constant 0 : index
    %c0_20 = arith.constant 0 : index
    %62 = vector.load %arg5[%c0_19, %c0_20] : memref<8x128xf32, #tpu.memory_space<vmem>>, vector<8x128xf32>
    tpu.vector_store %arg5[%c0_19, %c0_20], %61 {strides = array<i32>} : memref<8x128xf32, #tpu.memory_space<vmem>>, vector<8x128xf32>,
    return
  }
  func.func @transform_0(%arg0: i32) -> (i32, i32) {
    %c0_i32 = arith.constant 0 : i32
    %c0_i32_0 = arith.constant 0 : i32
    return %arg0, %c0_i32 : i32, i32
  }
  func.func @transform_1(%arg0: i32) -> (i32, i32, i32) {
    %c0_i32 = arith.constant 0 : i32
    %c0_i32_0 = arith.constant 0 : i32
    %c0_i32_1 = arith.constant 0 : i32
    return %c0_i32, %arg0, %c0_i32_0 : i32, i32, i32
  }
  func.func @transform_2(%arg0: i32) -> (i32, i32) {
    %c0_i32 = arith.constant 0 : i32
    %c0_i32_0 = arith.constant 0 : i32
    %c0_i32_1 = arith.constant 0 : i32
    return %c0_i32, %c0_i32_0 : i32, i32
  }
  func.func @transform_3(%arg0: i32) -> (i32, i32) {
    %c0_i32 = arith.constant 0 : i32
    %c0_i32_0 = arith.constant 0 : i32
    %c0_i32_1 = arith.constant 0 : i32
    return %c0_i32, %c0_i32_0 : i32, i32
  }
  func.func @transform_4(%arg0: i32) -> (i32, i32) {
    %c0_i32 = arith.constant 0 : i32
    %c0_i32_0 = arith.constant 0 : i32
    return %arg0, %c0_i32 : i32, i32
  }
}

</mosaic_0001>

<llo_original>
// kernel: encoder_forward.1
$region0: #{encoder_forward.1}
  #allocation0 [shape = 'u32[]', space=smem, size = 0x4, offset = 0x4, fixed_abs, tag = 'smem constant byte address 0x4 - core index']
  #allocation1 [shape = 'u32[144,128]{1,0:T(1,128)}', space=vmem, size = 0x12000, scoped, tag = 'internal scratch']
  %s0 = inlined_call_operand.vmem [shape: bf16[16,32], index: 0, kind: input, shape index: {}]
  %s1 = inlined_call_operand.vmem [shape: bf16[16,16,8], index: 1, kind: input, shape index: {}]
  %s2 = inlined_call_operand.vmem [shape: bf16[80,128], index: 2, kind: input, shape index: {}]
  %s3 = inlined_call_operand.vmem [shape: f32[8,128], index: 3, kind: input, shape index: {}]
  %s4 = inlined_call_operand.vmem [shape: f32[16,128], index: 4, kind: output, shape index: {}]
  %s5 = sld [smem:[#allocation0]]
  $region90: #{encoder_forward.1} parent=0
    _
  %s7 = ssub.s32 1, %s5
  %s8 = scalar_select 0, %s7, %s5
  $region1: #{encoder_forward.1} parent=0
    #allocation2 [shape = 'u8[65536]{0}', space=vmem, size = 0x10000, scoped, tag = 'input window, operand 1']
    loop: start=0, step=1, limit=4
    $region2: #{encoder_forward.1} parent=1 // loop_pre_header
      _
    $region3: #{encoder_forward.1} parent=1 // loop_header
      %s10 = sphi 0, %s14
      %p11 = scmp.ge.s32.totalorder %s10, 4
      %s20 = sphi 0, %s22
      %s23 = sphi 0, %s20
      %s24 = sphi 0, %s23
      %s40 = sphi 0, %s24
      %s46 = sphi 0, %s48
      %s49 = sphi 0, %s46
      %s50 = sphi 0, %s49
      %s66 = sphi 0, %s50
      %s70 = sphi 0, %s70
      %s72 = sphi 0, %s70
      %s73 = sphi 0, %s72
      %s87 = sphi 0, %s73
      %s91 = sphi 0, %s91
      %s93 = sphi 0, %s91
      %s94 = sphi 0, %s93
      %s108 = sphi 0, %s94
      %s114 = sphi 0, %s116
      %s117 = sphi 0, %s114
      %s118 = sphi 0, %s117
      %s134 = sphi 0, %s118
    $region4: #{encoder_forward.1} parent=1 // loop_header_branch
      %13 = sbr.rel (%p11) target = $region8
    $region5: #{encoder_forward.1} parent=1 // loop_body
      %s15 = ssub.s32 %s10, 1
      %s16 = ssub.s32 %s10, 2
      %s17 = sadd.s32 %s10, 1
      %s18 = ssub.s32 %s10, %s17
      %p19 = scmp.eq.s32.totalorder %s18, 0
      %s21 = sadd.s32 %s20, 1
      %s22 = scalar_select %p19, %s20, %s21
      %p25 = pneg %p19
      %p26 = scmp.eq.s32.totalorder %s10, 1
      %p27 = por %p25, %p26
      %p28 = scmp.ne.s32.totalorder %s20, %s23
      %p29 = scmp.eq.s32.totalorder %s10, 0
      %p30 = por %p28, %p29
      %p31 = scmp.ne.s32.totalorder %s20, %s23
      %p32 = scmp.eq.s32.totalorder %s15, 1
      %p33 = por %p31, %p32
      %p34 = scmp.ne.s32.totalorder %s23, %s24
      %p35 = scmp.eq.s32.totalorder %s15, 0
      %p36 = por %p34, %p35
      %p37 = scmp.ne.s32.totalorder %s23, %s24
      %p38 = scmp.eq.s32.totalorder %s16, 1
      %p39 = por %p37, %p38
      %p41 = scmp.ne.s32.totalorder %s24, %s40
      %p42 = scmp.eq.s32.totalorder %s16, 0
      %p43 = por %p41, %p42
      %s44 = ssub.s32 %s10, %s17
      %p45 = scmp.eq.s32.totalorder %s44, 0
      %s47 = sadd.s32 %s46, 1
      %s48 = scalar_select %p45, %s46, %s47
      %p51 = pneg %p45
      %p52 = scmp.eq.s32.totalorder %s10, 1
      %p53 = por %p51, %p52
      %p54 = scmp.ne.s32.totalorder %s46, %s49
      %p55 = scmp.eq.s32.totalorder %s10, 0
      %p56 = por %p54, %p55
      %p57 = scmp.ne.s32.totalorder %s46, %s49
      %p58 = scmp.eq.s32.totalorder %s15, 1
      %p59 = por %p57, %p58
      %p60 = scmp.ne.s32.totalorder %s49, %s50
      %p61 = scmp.eq.s32.totalorder %s15, 0
      %p62 = por %p60, %p61
      %p63 = scmp.ne.s32.totalorder %s49, %s50
      %p64 = scmp.eq.s32.totalorder %s16, 1
      %p65 = por %p63, %p64
      %p67 = scmp.ne.s32.totalorder %s50, %s66
      %p68 = scmp.eq.s32.totalorder %s16, 0
      %p69 = por %p67, %p68
      %s71 = sadd.s32 %s70, 1
      %p74 = scmp.eq.s32.totalorder %s10, 1
      %p75 = scmp.ne.s32.totalorder %s70, %s72
      %p76 = scmp.eq.s32.totalorder %s10, 0
      %p77 = por %p75, %p76
      %p78 = scmp.ne.s32.totalorder %s70, %s72
      %p79 = scmp.eq.s32.totalorder %s15, 1
      %p80 = por %p78, %p79
      %p81 = scmp.ne.s32.totalorder %s72, %s73
      %p82 = scmp.eq.s32.totalorder %s15, 0
      %p83 = por %p81, %p82
      %p84 = scmp.ne.s32.totalorder %s72, %s73
      %p85 = scmp.eq.s32.totalorder %s16, 1
      %p86 = por %p84, %p85
      %p88 = scmp.ne.s32.totalorder %s73, %s87
      %p89 = scmp.eq.s32.totalorder %s16, 0
      %p90 = por %p88, %p89
      %s92 = sadd.s32 %s91, 1
      %p95 = scmp.eq.s32.totalorder %s10, 1
      %p96 = scmp.ne.s32.totalorder %s91, %s93
      %p97 = scmp.eq.s32.totalorder %s10, 0
      %p98 = por %p96, %p97
      %p99 = scmp.ne.s32.totalorder %s91, %s93
      %p100 = scmp.eq.s32.totalorder %s15, 1
      %p101 = por %p99, %p100
      %p102 = scmp.ne.s32.totalorder %s93, %s94
      %p103 = scmp.eq.s32.totalorder %s15, 0
      %p104 = por %p102, %p103
      %p105 = scmp.ne.s32.totalorder %s93, %s94
      %p106 = scmp.eq.s32.totalorder %s16, 1
      %p107 = por %p105, %p106
      %p109 = scmp.ne.s32.totalorder %s94, %s108
      %p110 = scmp.eq.s32.totalorder %s16, 0
      %p111 = por %p109, %p110
      %s112 = ssub.s32 %s10, %s17
      %p113 = scmp.eq.s32.totalorder %s112, 0
      %s115 = sadd.s32 %s114, 1
      %s116 = scalar_select %p113, %s114, %s115
      %p119 = pneg %p113
      %p120 = scmp.eq.s32.totalorder %s10, 1
      %p121 = por %p119, %p120
      %p122 = scmp.ne.s32.totalorder %s114, %s117
      %p123 = scmp.eq.s32.totalorder %s10, 0
      %p124 = por %p122, %p123
      %p125 = scmp.ne.s32.totalorder %s114, %s117
      %p126 = scmp.eq.s32.totalorder %s15, 1
      %p127 = por %p125, %p126
      %p128 = scmp.ne.s32.totalorder %s117, %s118
      %p129 = scmp.eq.s32.totalorder %s15, 0
      %p130 = por %p128, %p129
      %p131 = scmp.ne.s32.totalorder %s117, %s118
      %p132 = scmp.eq.s32.totalorder %s16, 1
      %p133 = por %p131, %p132
      %p135 = scmp.ne.s32.totalorder %s118, %s134
      %p136 = scmp.eq.s32.totalorder %s16, 0
      %p137 = por %p135, %p136
      %p138 = scmp.le.s32.totalorder 1, %s10
      %p139 = scmp.lt.s32.totalorder %s10, 3
      %p140 = pnand %p138, %p139
      %p141 = pneg %p140
      // Predicated region
      $region9: #{encoder_forward.1} parent=5 // pred_check
        _
      $region10: #{encoder_forward.1} parent=5 // pred_check_branch
        %143 = sbr.rel (%p140) target = $region12
      $region11: #{encoder_forward.1} parent=5 // pred_region
        %s144 = ssub.s32 %s10, 1
        // Predicated region
        $region13: #{encoder_forward.1} parent=11 // pred_check
          %p145 = pneg %p83
        $region14: #{encoder_forward.1} parent=11 // pred_check_branch
          %147 = sbr.rel (%p145) target = $region16
        $region15: #{encoder_forward.1} parent=11 // pred_region
          _
        $region16: #{encoder_forward.1} parent=11 // pred_fallthru
          _
        // Predicated region
        $region17: #{encoder_forward.1} parent=11 // pred_check
          %p148 = pneg %p104
        $region18: #{encoder_forward.1} parent=11 // pred_check_branch
          %150 = sbr.rel (%p148) target = $region20
        $region19: #{encoder_forward.1} parent=11 // pred_region
          _
        $region20: #{encoder_forward.1} parent=11 // pred_fallthru
          _
      $region12: #{encoder_forward.1} parent=5 // pred_fallthru
        _
      %p151 = scmp.lt.s32.totalorder %s10, 2
      // Predicated region
      $region21: #{encoder_forward.1} parent=5 // pred_check
        %p152 = pneg %p151
      $region22: #{encoder_forward.1} parent=5 // pred_check_branch
        %154 = sbr.rel (%p152) target = $region24
      $region23: #{encoder_forward.1} parent=5 // pred_region
        // Predicated region
        $region25: #{encoder_forward.1} parent=23 // pred_check
          %p155 = pneg %p30
        $region26: #{encoder_forward.1} parent=23 // pred_check_branch
          %157 = sbr.rel (%p155) target = $region28
        $region27: #{encoder_forward.1} parent=23 // pred_region
          %p158 = scmp.lt.s32.totalorder %s10, 1
          %s159 = scalar_select %p158, %s10, 1
          %s160 = smul.addr %s159, 4
          %s161 = scalar_lea.vmem %s0, %s160
        $region28: #{encoder_forward.1} parent=23 // pred_fallthru
          _
        // Predicated region
        $region29: #{encoder_forward.1} parent=23 // pred_check
          %p162 = pneg %p56
        $region30: #{encoder_forward.1} parent=23 // pred_check_branch
          %164 = sbr.rel (%p162) target = $region32
        $region31: #{encoder_forward.1} parent=23 // pred_region
          %s165 = sand.u32 %s46, 1
          %s166 = sand.u32 %s46, 1
          %s167 = smul.addr %s166, 64
          %s168 = scalar_lea.vmem [#allocation2], %s167
          %s169 = smul.addr %s10, 4
          %s170 = scalar_lea.vmem %s1, %s169
          // Predicated region
          $region33: #{encoder_forward.1} parent=31 // pred_check
            _
          $region34: #{encoder_forward.1} parent=31 // pred_check_branch
            %172 = sbr.rel (0) target = $region36
          $region35: #{encoder_forward.1} parent=31 // pred_region
            // Predicated region
            $region37: #{encoder_forward.1} parent=35 // pred_check
              _
            $region38: #{encoder_forward.1} parent=35 // pred_check_branch
              %174 = sbr.rel target = $region40
            $region39: #{encoder_forward.1} parent=35 // pred_region
              // Predicated region
              $region52: #{encoder_forward.1} parent=39 // pred_check
                _
              $region53: #{encoder_forward.1} parent=39 // pred_check_branch
                %219 = sbr.rel (0) target = $region55
              $region54: #{encoder_forward.1} parent=39 // pred_region
                loop: start=0, step=1, limit=1
                $region56: #{encoder_forward.1} parent=54 // loop_pre_header
                  _
                $region57: #{encoder_forward.1} parent=54 // loop_header
                  %s221 = sphi 0, %s225
                  %p222 = scmp.ge.s32.totalorder %s221, 1
                  %s226 = sphi %s170, %s170
                  %s227 = sphi %s168, %s168
                $region58: #{encoder_forward.1} parent=54 // loop_header_branch
                  %224 = sbr.rel (%p222) target = $region62
                $region59: #{encoder_forward.1} parent=54 // loop_body
                  _
                $region60: #{encoder_forward.1} parent=54 // loop_footer
                  %s225 = sadd.s32 1, %s221
                $region61: #{encoder_forward.1} parent=54 // loop_footer_branch
                  %220 = sbr.rel target = $region57
                $region62: #{encoder_forward.1} parent=54 // loop_exit
                  _
                loop: start=0, step=1, limit=1
                $region63: #{encoder_forward.1} parent=54 // loop_pre_header
                  _
                $region64: #{encoder_forward.1} parent=54 // loop_header
                  %s230 = sphi 0, %s234
                  %p231 = scmp.ge.s32.totalorder %s230, 1
                  %s235 = sphi %s170, %s170
                  %s236 = sphi %s168, %s168
                $region65: #{encoder_forward.1} parent=54 // loop_header_branch
                  %233 = sbr.rel (%p231) target = $region69
                $region66: #{encoder_forward.1} parent=54 // loop_body
                  %v237 = vld [vmem:[%s235] sm:$0xf]
                  %238 = vst [vmem:[%s236] sm:$0xf] %v237
                  %v239 = vld [vmem:[%s235 + $0x8] sm:$0xf]
                  %240 = vst [vmem:[%s236 + $0x4] sm:$0xf] %v239
                  %v241 = vld [vmem:[%s235 + $0x10] sm:$0xf]
                  %242 = vst [vmem:[%s236 + $0x8] sm:$0xf] %v241
                  %v243 = vld [vmem:[%s235 + $0x18] sm:$0xf]
                  %244 = vst [vmem:[%s236 + $0xc] sm:$0xf] %v243
                  %v245 = vld [vmem:[%s235 + $0x20] sm:$0xf]
                  %246 = vst [vmem:[%s236 + $0x10] sm:$0xf] %v245
                  %v247 = vld [vmem:[%s235 + $0x28] sm:$0xf]
                  %248 = vst [vmem:[%s236 + $0x14] sm:$0xf] %v247
                  %v249 = vld [vmem:[%s235 + $0x30] sm:$0xf]
                  %250 = vst [vmem:[%s236 + $0x18] sm:$0xf] %v249
                  %v251 = vld [vmem:[%s235 + $0x38] sm:$0xf]
                  %252 = vst [vmem:[%s236 + $0x1c] sm:$0xf] %v251
                  %v253 = vld [vmem:[%s235 + $0x40] sm:$0xf]
                  %254 = vst [vmem:[%s236 + $0x20] sm:$0xf] %v253
                  %v255 = vld [vmem:[%s235 + $0x48] sm:$0xf]
                  %256 = vst [vmem:[%s236 + $0x24] sm:$0xf] %v255
                  %v257 = vld [vmem:[%s235 + $0x50] sm:$0xf]
                  %258 = vst [vmem:[%s236 + $0x28] sm:$0xf] %v257
                  %v259 = vld [vmem:[%s235 + $0x58] sm:$0xf]
                  %260 = vst [vmem:[%s236 + $0x2c] sm:$0xf] %v259
                  %v261 = vld [vmem:[%s235 + $0x60] sm:$0xf]
                  %262 = vst [vmem:[%s236 + $0x30] sm:$0xf] %v261
                  %v263 = vld [vmem:[%s235 + $0x68] sm:$0xf]
                  %264 = vst [vmem:[%s236 + $0x34] sm:$0xf] %v263
                  %v265 = vld [vmem:[%s235 + $0x70] sm:$0xf]
                  %266 = vst [vmem:[%s236 + $0x38] sm:$0xf] %v265
                  %v267 = vld [vmem:[%s235 + $0x78] sm:$0xf]
                  %268 = vst [vmem:[%s236 + $0x3c] sm:$0xf] %v267
                $region67: #{encoder_forward.1} parent=54 // loop_footer
                  %s234 = sadd.s32 1, %s230
                $region68: #{encoder_forward.1} parent=54 // loop_footer_branch
                  %229 = sbr.rel target = $region64
                $region69: #{encoder_forward.1} parent=54 // loop_exit
                  _
              $region55: #{encoder_forward.1} parent=39 // pred_fallthru
                _
            $region40: #{encoder_forward.1} parent=35 // pred_fallthru
              _
            // Predicated region
            $region41: #{encoder_forward.1} parent=35 // pred_check
              _
            $region42: #{encoder_forward.1} parent=35 // pred_check_branch
              %176 = sbr.rel (0) target = $region44
            $region43: #{encoder_forward.1} parent=35 // pred_region
              loop: start=0, step=1, limit=1
              $region45: #{encoder_forward.1} parent=43 // loop_pre_header
                _
              $region46: #{encoder_forward.1} parent=43 // loop_header
                %s179 = sphi 0, %s183
                %p180 = scmp.ge.s32.totalorder %s179, 1
                %s184 = sphi %s170, %s170
                %s185 = sphi %s168, %s168
              $region47: #{encoder_forward.1} parent=43 // loop_header_branch
                %182 = sbr.rel (%p180) target = $region51
              $region48: #{encoder_forward.1} parent=43 // loop_body
                %v186 = vld [vmem:[%s184] sm:$0xf]
                %187 = vst [vmem:[%s185] sm:$0xf] %v186
                %v188 = vld [vmem:[%s184 + $0x8] sm:$0xf]
                %189 = vst [vmem:[%s185 + $0x4] sm:$0xf] %v188
                %v190 = vld [vmem:[%s184 + $0x10] sm:$0xf]
                %191 = vst [vmem:[%s185 + $0x8] sm:$0xf] %v190
                %v192 = vld [vmem:[%s184 + $0x18] sm:$0xf]
                %193 = vst [vmem:[%s185 + $0xc] sm:$0xf] %v192
                %v194 = vld [vmem:[%s184 + $0x20] sm:$0xf]
                %195 = vst [vmem:[%s185 + $0x10] sm:$0xf] %v194
                %v196 = vld [vmem:[%s184 + $0x28] sm:$0xf]
                %197 = vst [vmem:[%s185 + $0x14] sm:$0xf] %v196
                %v198 = vld [vmem:[%s184 + $0x30] sm:$0xf]
                %199 = vst [vmem:[%s185 + $0x18] sm:$0xf] %v198
                %v200 = vld [vmem:[%s184 + $0x38] sm:$0xf]
                %201 = vst [vmem:[%s185 + $0x1c] sm:$0xf] %v200
                %v202 = vld [vmem:[%s184 + $0x40] sm:$0xf]
                %203 = vst [vmem:[%s185 + $0x20] sm:$0xf] %v202
                %v204 = vld [vmem:[%s184 + $0x48] sm:$0xf]
                %205 = vst [vmem:[%s185 + $0x24] sm:$0xf] %v204
                %v206 = vld [vmem:[%s184 + $0x50] sm:$0xf]
                %207 = vst [vmem:[%s185 + $0x28] sm:$0xf] %v206
                %v208 = vld [vmem:[%s184 + $0x58] sm:$0xf]
                %209 = vst [vmem:[%s185 + $0x2c] sm:$0xf] %v208
                %v210 = vld [vmem:[%s184 + $0x60] sm:$0xf]
                %211 = vst [vmem:[%s185 + $0x30] sm:$0xf] %v210
                %v212 = vld [vmem:[%s184 + $0x68] sm:$0xf]
                %213 = vst [vmem:[%s185 + $0x34] sm:$0xf] %v212
                %v214 = vld [vmem:[%s184 + $0x70] sm:$0xf]
                %215 = vst [vmem:[%s185 + $0x38] sm:$0xf] %v214
                %v216 = vld [vmem:[%s184 + $0x78] sm:$0xf]
                %217 = vst [vmem:[%s185 + $0x3c] sm:$0xf] %v216
              $region49: #{encoder_forward.1} parent=43 // loop_footer
                %s183 = sadd.s32 1, %s179
              $region50: #{encoder_forward.1} parent=43 // loop_footer_branch
                %178 = sbr.rel target = $region46
              $region51: #{encoder_forward.1} parent=43 // loop_exit
                _
            $region44: #{encoder_forward.1} parent=35 // pred_fallthru
              _
          $region36: #{encoder_forward.1} parent=31 // pred_fallthru
            _
          %269 = vnop
        $region32: #{encoder_forward.1} parent=23 // pred_fallthru
          _
      $region24: #{encoder_forward.1} parent=5 // pred_fallthru
        _
      %p270 = scmp.le.s32.totalorder 1, %s10
      %p271 = scmp.lt.s32.totalorder %s10, 3
      %p272 = pnand %p270, %p271
      %p273 = pneg %p272
      // Predicated region
      $region70: #{encoder_forward.1} parent=5 // pred_check
        _
      $region71: #{encoder_forward.1} parent=5 // pred_check_branch
        %275 = sbr.rel (%p272) target = $region73
      $region72: #{encoder_forward.1} parent=5 // pred_region
        %s276 = ssub.s32 %s10, 1
        %s277 = sand.u32 %s49, 1
        %s278 = sand.u32 %s49, 1
        %s279 = smul.addr %s278, 64
        %s280 = scalar_lea.vmem [#allocation2], %s279
        // Predicated region
        $region74: #{encoder_forward.1} parent=72 // pred_check
          %p281 = pneg %p62
        $region75: #{encoder_forward.1} parent=72 // pred_check_branch
          %283 = sbr.rel (%p281) target = $region77
        $region76: #{encoder_forward.1} parent=72 // pred_region
          _
        $region77: #{encoder_forward.1} parent=72 // pred_fallthru
          _
        %p284 = scmp.lt.s32.totalorder %s15, 1
        %s285 = scalar_select %p284, %s15, 1
        %s286 = smul.addr %s285, 4
        %s287 = scalar_lea.vmem %s0, %s286
        %p288 = pneg %p36
        %p289 = pneg %p33
        %s290 = sand.u32 %s49, 1
        %s291 = sand.u32 %s49, 1
        %s292 = smul.addr %s291, 64
        %s293 = scalar_lea.vmem [#allocation2], %s292
        %p294 = pneg %p62
        %p295 = pneg %p59
        %p296 = pneg %p83
        %p297 = pneg %p80
        %p298 = pneg %p104
        %p299 = pneg %p101
        %p300 = pneg %p130
        %p301 = pneg %p127
        %p302 = scmp.lt.s32.totalorder %s15, 1
        %s303 = scalar_select %p302, %s15, 1
        %s304 = smul.addr %s303, 8
        %s305 = scalar_lea.vmem %s4, %s304
        %p306 = scmp.lt.s32.totalorder %s15, 1
        %s307 = scalar_select %p306, %s15, 1
        %s308 = smul.addr %s307, 4
        %s309 = scalar_lea.vmem %s0, %s308
        %p310 = scmp.lt.s32.totalorder %s15, 1
        %s311 = scalar_select %p310, %s15, 1
        %s312 = smul.addr %s311, 8
        %s313 = scalar_lea.vmem %s4, %s312
        %v315 = vld [vmem:[%s309] sm:$0xf]
        %v316 = vld [vmem:[%s2] sm:$0xf]
        %v317 = vld [vmem:[%s2 + $0x4] sm:$0xf]
        %v318 = vld [vmem:[%s2 + $0x8] sm:$0xf]
        %v319 = vld [vmem:[%s2 + $0xc] sm:$0xf]
        %v320 = vld [vmem:[%s3] sm:$0x1]
        %v321 = vlaneseq
        %v322 = vshrl.u32 %v321, 7
        %v323 = vsub.s32 0, %v322
        %v324 = vrot.slane %v320, %v323
        %v329 = vunpack.c.l.b16 %v316
        %v330 = vunpack.c.l.b16 %v317
        %v331 = vunpack.c.l.b16 %v318
        %v332 = vunpack.c.l.b16 %v319
        %v333 = vpack.c.b16 %v330, %v329
        %v334 = vpack.c.b16 %v332, %v331
        %vm337 = vcmask 261120
        %v339 = vsel %vm337, %v315, 0
        %341 = vmatprep.subr.bf16.mxu0 0
        %342 = vmatpush1.bf16.msra.mxu0 %v333
        %343 = vmatprep.subr.bf16.mxu0 0
        %344 = vmatpush1.bf16.msra.mxu0 %v334
        %345 = vmatprep.subr.bf16.mxu0 0
        %346 = vmatpush1.bf16.msra.mxu0 0
        %347 = vmatprep.subr.bf16.mxu0 0
        %348 = vmatpush1.bf16.msra.mxu0 0
        %349 = vmatprep.subr.bf16.mxu0 0
        %350 = vmatpush1.bf16.msra.mxu0 0
        %351 = vmatprep.subr.bf16.mxu0 0
        %352 = vmatpush1.bf16.msra.mxu0 0
        %353 = vmatprep.subr.bf16.mxu0 0
        %354 = vmatpush1.bf16.msra.mxu0 0
        %355 = vmatprep.subr.bf16.mxu0 0
        %356 = vmatpush1.bf16.msra.mxu0 0
        %357 = vmatprep.subr.bf16.mxu0 0
        %358 = vmatpush1.bf16.msra.mxu0 0
        %359 = vmatprep.subr.bf16.mxu0 0
        %360 = vmatpush1.bf16.msra.mxu0 0
        %361 = vmatprep.subr.bf16.mxu0 0
        %362 = vmatpush1.bf16.msra.mxu0 0
        %363 = vmatprep.subr.bf16.mxu0 0
        %364 = vmatpush1.bf16.msra.mxu0 0
        %365 = vmatprep.subr.bf16.mxu0 0
        %366 = vmatpush1.bf16.msra.mxu0 0
        %367 = vmatprep.subr.bf16.mxu0 0
        %368 = vmatpush1.bf16.msra.mxu0 0
        %369 = vmatprep.subr.bf16.mxu0 0
        %370 = vmatpush1.bf16.msra.mxu0 0
        %371 = vmatprep.subr.bf16.mxu0 0
        %372 = vmatpush1.bf16.msra.mxu0 0
        %373 = vmatprep.mubr.bf16.mxu0 0
        %374 = vmatmul.mubr.bf16.gmra.mrb[0].mxu0 %v339
        %v375 = vpop.f32.mrb[0].mxu0
        %v376 = vadd.f32 %v324, %v375
        %v377 = vpop.f32.mrb[0].mxu0
        %v378 = vpop.f32.mrb[0].mxu0
        %v379 = vpop.f32.mrb[0].mxu0
        %380 = vdwg.mxu0
        %v381 = vmax.f32 %v376, 0.0
        %v382 = vld [vmem:[%s2 + $0x10] sm:$0xf]
        %v383 = vld [vmem:[%s2 + $0x14] sm:$0xf]
        %v384 = vld [vmem:[%s2 + $0x18] sm:$0xf]
        %v385 = vld [vmem:[%s2 + $0x1c] sm:$0xf]
        %v386 = vpack.c.bf16 %v381, %v381
        %v387 = vld [vmem:[%s3 + $0x1] sm:$0x1]
        %v388 = vlaneseq
        %v389 = vshrl.u32 %v388, 7
        %v390 = vsub.s32 0, %v389
        %v391 = vrot.slane %v387, %v390
        %393 = vrot.lane.b32.xlu0 %v386, 64
        %v394 = vpop.permute.xlu0 %393
        %v399 = vunpack.c.l.b16 %v382
        %v400 = vunpack.c.l.b16 %v383
        %v401 = vunpack.c.l.b16 %v384
        %v402 = vunpack.c.l.b16 %v385
        %v403 = vpack.c.b16 %v400, %v399
        %v404 = vpack.c.b16 %v402, %v401
        %v408 = vsel %vm337, %v394, 0
        %410 = vmatprep.subr.bf16.mxu0 0
        %411 = vmatpush1.bf16.msra.mxu0 %v403
        %412 = vmatprep.subr.bf16.mxu0 0
        %413 = vmatpush1.bf16.msra.mxu0 %v404
        %414 = vmatprep.subr.bf16.mxu0 0
        %415 = vmatpush1.bf16.msra.mxu0 0
        %416 = vmatprep.subr.bf16.mxu0 0
        %417 = vmatpush1.bf16.msra.mxu0 0
        %418 = vmatprep.subr.bf16.mxu0 0
        %419 = vmatpush1.bf16.msra.mxu0 0
        %420 = vmatprep.subr.bf16.mxu0 0
        %421 = vmatpush1.bf16.msra.mxu0 0
        %422 = vmatprep.subr.bf16.mxu0 0
        %423 = vmatpush1.bf16.msra.mxu0 0
        %424 = vmatprep.subr.bf16.mxu0 0
        %425 = vmatpush1.bf16.msra.mxu0 0
        %426 = vmatprep.subr.bf16.mxu0 0
        %427 = vmatpush1.bf16.msra.mxu0 0
        %428 = vmatprep.subr.bf16.mxu0 0
        %429 = vmatpush1.bf16.msra.mxu0 0
        %430 = vmatprep.subr.bf16.mxu0 0
        %431 = vmatpush1.bf16.msra.mxu0 0
        %432 = vmatprep.subr.bf16.mxu0 0
        %433 = vmatpush1.bf16.msra.mxu0 0
        %434 = vmatprep.subr.bf16.mxu0 0
        %435 = vmatpush1.bf16.msra.mxu0 0
        %436 = vmatprep.subr.bf16.mxu0 0
        %437 = vmatpush1.bf16.msra.mxu0 0
        %438 = vmatprep.subr.bf16.mxu0 0
        %439 = vmatpush1.bf16.msra.mxu0 0
        %440 = vmatprep.subr.bf16.mxu0 0
        %441 = vmatpush1.bf16.msra.mxu0 0
        %442 = vmatprep.mubr.bf16.mxu0 0
        %443 = vmatmul.mubr.bf16.gmra.mrb[0].mxu0 %v408
        %v444 = vpop.f32.mrb[0].mxu0
        %v445 = vadd.f32 %v391, %v444
        %v446 = vpop.f32.mrb[0].mxu0
        %v447 = vpop.f32.mrb[0].mxu0
        %v448 = vpop.f32.mrb[0].mxu0
        %449 = vdwg.mxu0
        %v450 = vmax.f32 %v445, 0.0
        %v451 = vld [vmem:[%s280] sm:$0xf]
        %v452 = vld [vmem:[%s280 + $0x4] sm:$0xf]
        %v453 = vld [vmem:[%s280 + $0x8] sm:$0xf]
        %v454 = vld [vmem:[%s280 + $0xc] sm:$0xf]
        %v455 = vld [vmem:[%s280 + $0x10] sm:$0xf]
        %v456 = vld [vmem:[%s280 + $0x14] sm:$0xf]
        %v457 = vld [vmem:[%s280 + $0x18] sm:$0xf]
        %v458 = vld [vmem:[%s280 + $0x1c] sm:$0xf]
        %v459 = vld [vmem:[%s280 + $0x20] sm:$0xf]
        %v460 = vld [vmem:[%s280 + $0x24] sm:$0xf]
        %v461 = vld [vmem:[%s280 + $0x28] sm:$0xf]
        %v462 = vld [vmem:[%s280 + $0x2c] sm:$0xf]
        %v463 = vld [vmem:[%s280 + $0x30] sm:$0xf]
        %v464 = vld [vmem:[%s280 + $0x34] sm:$0xf]
        %v465 = vld [vmem:[%s280 + $0x38] sm:$0xf]
        %v466 = vld [vmem:[%s280 + $0x3c] sm:$0xf]
        %v467 = vld [vmem:[%s2 + $0x20] sm:$0xf]
        %v468 = vld [vmem:[%s3 + $0x2] sm:$0x1]
        %v469 = vlaneseq
        %v470 = vshrl.u32 %v469, 7
        %v471 = vsub.s32 0, %v470
        %v472 = vrot.slane %v468, %v471
        %v489 = vunpack.c.l.b16 %v451
        %v490 = vunpack.c.l.b16 %v452
        %v491 = vunpack.c.l.b16 %v453
        %v492 = vunpack.c.l.b16 %v454
        %v493 = vunpack.c.l.b16 %v455
        %v494 = vunpack.c.l.b16 %v456
        %v495 = vunpack.c.l.b16 %v457
        %v496 = vunpack.c.l.b16 %v458
        %v497 = vunpack.c.l.b16 %v459
        %v498 = vunpack.c.l.b16 %v460
        %v499 = vunpack.c.l.b16 %v461
        %v500 = vunpack.c.l.b16 %v462
        %v501 = vunpack.c.l.b16 %v463
        %v502 = vunpack.c.l.b16 %v464
        %v503 = vunpack.c.l.b16 %v465
        %v504 = vunpack.c.l.b16 %v466
        %v505 = vpack.c.b16 %v490, %v489
        %v506 = vpack.c.b16 %v492, %v491
        %v507 = vpack.c.b16 %v494, %v493
        %v508 = vpack.c.b16 %v496, %v495
        %v509 = vpack.c.b16 %v498, %v497
        %v510 = vpack.c.b16 %v500, %v499
        %v511 = vpack.c.b16 %v502, %v501
        %v512 = vpack.c.b16 %v504, %v503
        %vm513 = vcmask 64512
        %v515 = vsel %vm513, %v505, 0
        %v518 = vsel %vm513, %v506, 0
        %v521 = vsel %vm513, %v507, 0
        %v524 = vsel %vm513, %v508, 0
        %v527 = vsel %vm513, %v509, 0
        %v530 = vsel %vm513, %v510, 0
        %v533 = vsel %vm513, %v511, 0
        %v536 = vsel %vm513, %v512, 0
        %vm538 = vcmask 1043456
        %v540 = vsel %vm538, %v467, 0
        %542 = vmatprep.subr.bf16.mxu0 0
        %543 = vmatpush1.bf16.msra.mxu0 %v540
        %544 = vmatprep.subr.bf16.mxu0 0
        %545 = vmatpush1.bf16.msra.mxu0 0
        %546 = vmatprep.subr.bf16.mxu0 0
        %547 = vmatpush1.bf16.msra.mxu0 0
        %548 = vmatprep.subr.bf16.mxu0 0
        %549 = vmatpush1.bf16.msra.mxu0 0
        %550 = vmatprep.subr.bf16.mxu0 0
        %551 = vmatpush1.bf16.msra.mxu0 0
        %552 = vmatprep.subr.bf16.mxu0 0
        %553 = vmatpush1.bf16.msra.mxu0 0
        %554 = vmatprep.subr.bf16.mxu0 0
        %555 = vmatpush1.bf16.msra.mxu0 0
        %556 = vmatprep.subr.bf16.mxu0 0
        %557 = vmatpush1.bf16.msra.mxu0 0
        %558 = vmatprep.subr.bf16.mxu0 0
        %559 = vmatpush1.bf16.msra.mxu0 0
        %560 = vmatprep.subr.bf16.mxu0 0
        %561 = vmatpush1.bf16.msra.mxu0 0
        %562 = vmatprep.subr.bf16.mxu0 0
        %563 = vmatpush1.bf16.msra.mxu0 0
        %564 = vmatprep.subr.bf16.mxu0 0
        %565 = vmatpush1.bf16.msra.mxu0 0
        %566 = vmatprep.subr.bf16.mxu0 0
        %567 = vmatpush1.bf16.msra.mxu0 0
        %568 = vmatprep.subr.bf16.mxu0 0
        %569 = vmatpush1.bf16.msra.mxu0 0
        %570 = vmatprep.subr.bf16.mxu0 0
        %571 = vmatpush1.bf16.msra.mxu0 0
        %572 = vmatprep.subr.bf16.mxu0 0
        %573 = vmatpush1.bf16.msra.mxu0 0
        %574 = vmatprep.mubr.bf16.mxu0 0
        %575 = vmatmul.mubr.bf16.gmra.mrb[0].mxu0 %v515
        %v576 = vpop.f32.mrb[0].mxu0
        %v577 = vadd.f32 %v472, %v576
        %v578 = vpop.f32.mrb[0].mxu0
        %v579 = vpop.f32.mrb[0].mxu0
        %v580 = vadd.f32 %v472, %v579
        %v581 = vpop.f32.mrb[0].mxu0
        %582 = vmatprep.mubr.bf16.mxu0 0
        %583 = vmatmul.mubr.bf16.gmra.mrb[0].mxu0 %v518
        %v584 = vpop.f32.mrb[0].mxu0
        %v585 = vadd.f32 %v472, %v584
        %v586 = vpop.f32.mrb[0].mxu0
        %v587 = vpop.f32.mrb[0].mxu0
        %v588 = vadd.f32 %v472, %v587
        %v589 = vpop.f32.mrb[0].mxu0
        %590 = vmatprep.mubr.bf16.mxu0 0
        %591 = vmatmul.mubr.bf16.gmra.mrb[0].mxu0 %v521
        %v592 = vpop.f32.mrb[0].mxu0
        %v593 = vadd.f32 %v472, %v592
        %v594 = vpop.f32.mrb[0].mxu0
        %v595 = vpop.f32.mrb[0].mxu0
        %v596 = vadd.f32 %v472, %v595
        %v597 = vpop.f32.mrb[0].mxu0
        %598 = vmatprep.mubr.bf16.mxu0 0
        %599 = vmatmul.mubr.bf16.gmra.mrb[0].mxu0 %v524
        %v600 = vpop.f32.mrb[0].mxu0
        %v601 = vadd.f32 %v472, %v600
        %v602 = vpop.f32.mrb[0].mxu0
        %v603 = vpop.f32.mrb[0].mxu0
        %v604 = vadd.f32 %v472, %v603
        %v605 = vpop.f32.mrb[0].mxu0
        %606 = vmatprep.mubr.bf16.mxu0 0
        %607 = vmatmul.mubr.bf16.gmra.mrb[0].mxu0 %v527
        %v608 = vpop.f32.mrb[0].mxu0
        %v609 = vadd.f32 %v472, %v608
        %v610 = vpop.f32.mrb[0].mxu0
        %v611 = vpop.f32.mrb[0].mxu0
        %v612 = vadd.f32 %v472, %v611
        %v613 = vpop.f32.mrb[0].mxu0
        %614 = vmatprep.mubr.bf16.mxu0 0
        %615 = vmatmul.mubr.bf16.gmra.mrb[0].mxu0 %v530
        %v616 = vpop.f32.mrb[0].mxu0
        %v617 = vadd.f32 %v472, %v616
        %v618 = vpop.f32.mrb[0].mxu0
        %v619 = vpop.f32.mrb[0].mxu0
        %v620 = vadd.f32 %v472, %v619
        %v621 = vpop.f32.mrb[0].mxu0
        %622 = vmatprep.mubr.bf16.mxu0 0
        %623 = vmatmul.mubr.bf16.gmra.mrb[0].mxu0 %v533
        %v624 = vpop.f32.mrb[0].mxu0
        %v625 = vadd.f32 %v472, %v624
        %v626 = vpop.f32.mrb[0].mxu0
        %v627 = vpop.f32.mrb[0].mxu0
        %v628 = vadd.f32 %v472, %v627
        %v629 = vpop.f32.mrb[0].mxu0
        %630 = vmatprep.mubr.bf16.mxu0 0
        %631 = vmatmul.mubr.bf16.gmra.mrb[0].mxu0 %v536
        %v632 = vpop.f32.mrb[0].mxu0
        %v633 = vadd.f32 %v472, %v632
        %v634 = vpop.f32.mrb[0].mxu0
        %v635 = vpop.f32.mrb[0].mxu0
        %v636 = vadd.f32 %v472, %v635
        %v637 = vpop.f32.mrb[0].mxu0
        %638 = vdwg.mxu0
        %v639 = vmax.f32 %v577, 0.0
        %v640 = vmax.f32 %v580, 0.0
        %v641 = vmax.f32 %v585, 0.0
        %v642 = vmax.f32 %v588, 0.0
        %v643 = vmax.f32 %v593, 0.0
        %v644 = vmax.f32 %v596, 0.0
        %v645 = vmax.f32 %v601, 0.0
        %v646 = vmax.f32 %v604, 0.0
        %v647 = vmax.f32 %v609, 0.0
        %v648 = vmax.f32 %v612, 0.0
        %v649 = vmax.f32 %v617, 0.0
        %v650 = vmax.f32 %v620, 0.0
        %v651 = vmax.f32 %v625, 0.0
        %v652 = vmax.f32 %v628, 0.0
        %v653 = vmax.f32 %v633, 0.0
        %v654 = vmax.f32 %v636, 0.0
        %v655 = vadd.f32 %v639, %v640
        %v656 = vadd.f32 %v655, %v641
        %v657 = vadd.f32 %v656, %v642
        %v658 = vadd.f32 %v657, %v643
        %v659 = vadd.f32 %v658, %v644
        %v660 = vadd.f32 %v659, %v645
        %v661 = vadd.f32 %v660, %v646
        %v662 = vadd.f32 %v661, %v647
        %v663 = vadd.f32 %v662, %v648
        %v664 = vadd.f32 %v663, %v649
        %v665 = vadd.f32 %v664, %v650
        %v666 = vadd.f32 %v665, %v651
        %v667 = vadd.f32 %v666, %v652
        %v668 = vadd.f32 %v667, %v653
        %v669 = vadd.f32 %v668, %v654
        %v670 = vmul.f32 %v669, 0.0625
        %672 = vrot.lane.b32.xlu0 %v450, 64
        %v673 = vpop.permute.xlu0 %672
        %676 = vrot.lane.b32.xlu0 %v670, 80
        %v677 = vpop.permute.xlu0 %676
        %vm679 = vcmask 523264
        %v680 = vsel %vm679, %v381, %v673
        %vm681 = vcmask 654336
        %v682 = vsel %vm681, %v680, %v677
        %vm683 = vcmask 818176
        %v684 = vsel %vm683, %v682, 0.0
        %685 = vst [vmem:[%s313] sm:$0xff] %v684
        %p686 = scmp.lt.s32.totalorder %s15, 1
        %s687 = scalar_select %p686, %s15, 1
        %s688 = smul.addr %s687, 8
        %s689 = scalar_lea.vmem %s4, %s688
        // Predicated region
        $region78: #{encoder_forward.1} parent=72 // pred_check
          %p690 = pneg %p127
        $region79: #{encoder_forward.1} parent=72 // pred_check_branch
          %692 = sbr.rel (%p690) target = $region81
        $region80: #{encoder_forward.1} parent=72 // pred_region
          _
        $region81: #{encoder_forward.1} parent=72 // pred_fallthru
          _
      $region73: #{encoder_forward.1} parent=5 // pred_fallthru
        _
      %p693 = scmp.le.s32.totalorder 2, %s10
      // Predicated region
      $region82: #{encoder_forward.1} parent=5 // pred_check
        %p694 = pneg %p693
      $region83: #{encoder_forward.1} parent=5 // pred_check_branch
        %696 = sbr.rel (%p694) target = $region85
      $region84: #{encoder_forward.1} parent=5 // pred_region
        %s697 = ssub.s32 %s10, 2
        // Predicated region
        $region86: #{encoder_forward.1} parent=84 // pred_check
          %p698 = pneg %p133
        $region87: #{encoder_forward.1} parent=84 // pred_check_branch
          %700 = sbr.rel (%p698) target = $region89
        $region88: #{encoder_forward.1} parent=84 // pred_region
          %p701 = scmp.lt.s32.totalorder %s16, 1
          %s702 = scalar_select %p701, %s16, 1
          %s703 = smul.addr %s702, 8
          %s704 = scalar_lea.vmem %s4, %s703
        $region89: #{encoder_forward.1} parent=84 // pred_fallthru
          _
      $region85: #{encoder_forward.1} parent=5 // pred_fallthru
        _
    $region6: #{encoder_forward.1} parent=1 // loop_footer
      %s14 = sadd.s32 1, %s10
    $region7: #{encoder_forward.1} parent=1 // loop_footer_branch
      %9 = sbr.rel target = $region3
    $region8: #{encoder_forward.1} parent=1 // loop_exit
      _

</llo_original>
